<compile_context>
chip_gen: v7x
topology: tpu7x:2x2x1
jax: 0.10.0
libtpu: 0.0.40
codegen_flags: <defaults>
</compile_context>

<pallas_src>
import math
import functools

import jax
import jax.numpy as jnp
from jax.experimental import pallas as pl
from jax.experimental.pallas import tpu as pltpu


def eca_kernel_size(channels, gamma=2, b=1):
    k = int(abs((math.log(channels, 2) + b) / gamma))
    return k if k % 2 else k + 1


def _channel_conv_sigmoid(mean_f32, w_ref, kernel_size):
    """mean_f32: (1, C) fp32 lane vector; w_ref: (K,) fp32 conv weights in SMEM."""
    C = mean_f32.shape[-1]
    pad = kernel_size // 2
    yp = jnp.pad(mean_f32, ((0, 0), (pad, pad)))       # (1, C + 2*pad), zero padded
    conv = w_ref[0] * yp[:, 0:C]
    for j in range(1, kernel_size):                    # K is tiny; static unroll
        conv = conv + w_ref[j] * yp[:, j:j + C]
    return jax.nn.sigmoid(conv)                        # (1, C) fp32


def _eca_single_kernel(w_ref, x_ref, o_ref, *, kernel_size, hw_total):
    # x_ref / o_ref: (1, HW, C) block for one batch element.
    x = x_ref[0]                                       # (HW, C), native dtype
    # fp32-accumulated global average pool over the spatial (sublane) axis.
    mean = jnp.sum(x, axis=0, keepdims=True, dtype=jnp.float32) * (1.0 / hw_total)
    gate = _channel_conv_sigmoid(mean, w_ref, kernel_size)        # (1, C) fp32
    o_ref[0] = x * gate.astype(o_ref.dtype)            # broadcast over sublanes


def _eca_pool_kernel(w_ref, x_ref, g_ref, acc_ref, *,
                     kernel_size, hw_total, tile_hw):
    # Pass 1 of the tiled path: accumulate per-channel sums across spatial tiles,
    # finalize with the channel conv + sigmoid gate on the last tile.
    t = pl.program_id(1)

    @pl.when(t == 0)
    def _():
        acc_ref[...] = jnp.zeros_like(acc_ref)

    x = x_ref[0]                                       # (tile_hw, C)
    if hw_total % tile_hw != 0:
        # Mask rows of the (padded) final tile that fall outside the image.
        row = t * tile_hw + jax.lax.broadcasted_iota(jnp.int32, x.shape, 0)
        x = jnp.where(row < hw_total, x, jnp.zeros_like(x))
    acc_ref[...] += jnp.sum(x, axis=0, keepdims=True, dtype=jnp.float32)

    @pl.when(t == pl.num_programs(1) - 1)
    def _():
        mean = acc_ref[...] * (1.0 / hw_total)                    # (1, C) fp32
        g_ref[0] = _channel_conv_sigmoid(mean, w_ref, kernel_size).astype(g_ref.dtype)


def _eca_gate_kernel(g_ref, x_ref, o_ref):
    # Pass 2 of the tiled path: broadcast-multiply each spatial tile by its gate.
    # g_ref: (1, 1, C) fp32 gate; x_ref / o_ref: (1, tile_hw, C).
    o_ref[0] = x_ref[0] * g_ref[0].astype(o_ref.dtype)


def _vmem_limit(block_bytes):
    # Double-buffered input + output (+ headroom), capped for v7x's 64 MiB VMEM.
    return int(min(64 * 1024 * 1024, max(16 * 1024 * 1024, 5 * block_bytes)))


def _pick_tile_hw(hw, c, itemsize, max_block_bytes):
    cap = (max_block_bytes // max(1, c * itemsize)) // 8 * 8
    cap = max(8, min(1024, cap))                       # target ~512-1024 rows
    if hw <= cap:
        return hw
    for t in range(cap, 7, -8):                        # prefer an exact divisor
        if hw % t == 0:
            return t
    return cap                                         # ragged last tile (masked)


def eca_forward_nhwc(x_nhwc, weight, *, max_block_bytes=4 * 1024 * 1024):
    """Core kernel entry. x_nhwc: (B, H*W, C) channels-last; weight: (1, 1, K)."""
    B, HW, C = x_nhwc.shape
    K = weight.shape[-1]
    w = weight.reshape(K).astype(jnp.float32)
    itemsize = x_nhwc.dtype.itemsize
    block_bytes = HW * C * itemsize

    if block_bytes <= max_block_bytes:
        # Single pass: one whole (HW, C) image per grid step; x read once.
        return pl.pallas_call(
            functools.partial(_eca_single_kernel, kernel_size=K, hw_total=HW),
            out_shape=jax.ShapeDtypeStruct((B, HW, C), x_nhwc.dtype),
            grid_spec=pltpu.PrefetchScalarGridSpec(
                num_scalar_prefetch=0,
                grid=(B,),
                in_specs=[
                    pl.BlockSpec(memory_space=pltpu.MemorySpace.SMEM),   # conv weights
                    pl.BlockSpec((1, HW, C), lambda bi: (bi, 0, 0)),     # x block
                ],
                out_specs=pl.BlockSpec((1, HW, C), lambda bi: (bi, 0, 0)),
            ),
            compiler_params=pltpu.CompilerParams(
                dimension_semantics=("parallel",),
                vmem_limit_bytes=_vmem_limit(block_bytes),
            ),
        )(w, x_nhwc)

    # Tiled two-pass path for large feature maps (keeps VMEM bounded on v7x).
    tile_hw = _pick_tile_hw(HW, C, itemsize, max_block_bytes)
    n_tiles = pl.cdiv(HW, tile_hw)
    tile_bytes = tile_hw * C * itemsize

    gate = pl.pallas_call(
        functools.partial(_eca_pool_kernel, kernel_size=K, hw_total=HW,
                          tile_hw=tile_hw),
        out_shape=jax.ShapeDtypeStruct((B, 1, C), jnp.float32),
        grid_spec=pltpu.PrefetchScalarGridSpec(
            num_scalar_prefetch=0,
            grid=(B, n_tiles),
            in_specs=[
                pl.BlockSpec(memory_space=pltpu.MemorySpace.SMEM),
                pl.BlockSpec((1, tile_hw, C), lambda bi, ti: (bi, ti, 0)),
            ],
            out_specs=pl.BlockSpec((1, 1, C), lambda bi, ti: (bi, 0, 0)),
            scratch_shapes=[pltpu.VMEM((1, C), jnp.float32)],
        ),
        compiler_params=pltpu.CompilerParams(
            dimension_semantics=("parallel", "arbitrary"),
            vmem_limit_bytes=_vmem_limit(tile_bytes),
        ),
    )(w, x_nhwc)

    return pl.pallas_call(
        _eca_gate_kernel,
        out_shape=jax.ShapeDtypeStruct((B, HW, C), x_nhwc.dtype),
        grid_spec=pltpu.PrefetchScalarGridSpec(
            num_scalar_prefetch=0,
            grid=(B, n_tiles),
            in_specs=[
                pl.BlockSpec((1, 1, C), lambda bi, ti: (bi, 0, 0)),
                pl.BlockSpec((1, tile_hw, C), lambda bi, ti: (bi, ti, 0)),
            ],
            out_specs=pl.BlockSpec((1, tile_hw, C), lambda bi, ti: (bi, ti, 0)),
        ),
        compiler_params=pltpu.CompilerParams(
            dimension_semantics=("parallel", "parallel"),
            vmem_limit_bytes=_vmem_limit(tile_bytes),
        ),
    )(gate, x_nhwc)


def eca_forward(x, weight, **kwargs):
    """PyTorch-parity entry point: x is NCHW (B, C, H, W); weight is (1, 1, K)."""
    B, C, H, W = x.shape
    # Layout plumbing: channels-last so the kernel's lane axis is C (lane-dense).
    x_nhwc = jnp.transpose(x.reshape(B, C, H * W), (0, 2, 1))
    out = eca_forward_nhwc(x_nhwc, weight, **kwargs)
    return jnp.transpose(out, (0, 2, 1)).reshape(B, C, H, W)


def _eca_reference(x, weight):
    """Plain-JAX reference mirroring the PyTorch module."""
    B, C, H, W = x.shape
    K = weight.shape[-1]
    pad = K // 2
    y = jnp.mean(x.astype(jnp.float32), axis=(2, 3))            # (B, C)
    yp = jnp.pad(y, ((0, 0), (pad, pad)))                       # (B, C + 2*pad)
    w = weight.reshape(K).astype(jnp.float32)
    conv = sum(w[j] * yp[:, j:j + C] for j in range(K))         # (B, C)
    gate = jax.nn.sigmoid(conv)[:, :, None, None]               # (B, C, 1, 1)
    return (x.astype(jnp.float32) * gate).astype(x.dtype)


if __name__ == "__main__":
    root = jax.random.PRNGKey(0)

    def run_case(case_id, B, C, H, W, dtype=jnp.float32, **kwargs):
        K = eca_kernel_size(C)
        kx, kwt = jax.random.split(jax.random.fold_in(root, case_id))
        x = jax.random.normal(kx, (B, C, H, W), dtype=dtype)
        bound = 1.0 / math.sqrt(K)
        weight = jax.random.uniform(kwt, (1, 1, K), minval=-bound, maxval=bound,
                                    dtype=jnp.float32)
        out = eca_forward(x, weight, **kwargs)
        jax.block_until_ready(out)
        ref = _eca_reference(x, weight)
        assert out.shape == x.shape
        assert jnp.allclose(out.astype(jnp.float32), ref.astype(jnp.float32),
                            atol=2e-5, rtol=2e-5), f"mismatch vs reference (case {case_id})"

    # Small shape -> single-block-per-batch path (C=16 gives k=3, padding=1).
    run_case(0, B=2, C=16, H=8, W=8)
    # Moderate shape forced down the spatially-tiled two-kernel path (C=128 -> k=5).
    run_case(1, B=2, C=128, H=32, W=32, max_block_bytes=128 * 1024)

    print("KERNEL_OK")
</pallas_src>

<mosaic_0001>
module attributes {stable_mosaic.version = 11 : i64} {
  func.func @_eca_single_kernel(%arg0: i32, %arg1: memref<3xf32, #tpu.memory_space<smem>>, %arg2: memref<1x64x16xf32, #tpu.memory_space<vmem>>, %arg3: memref<1x64x16xf32, #tpu.memory_space<vmem>>) attributes {dimension_semantics = [#tpu.dimension_semantics<parallel>], iteration_bounds = array<i64: 2>, scalar_prefetch = 0 : i64, scratch_operands = 0 : i64, tpu.core_type = #tpu.core_type<tc>, window_params = [{transform_indices = @transform_0, window_bounds = array<i64: 3>}, {transform_indices = @transform_1, window_bounds = array<i64: 1, 64, 16>}, {transform_indices = @transform_2, window_bounds = array<i64: 1, 64, 16>}]} {
    %c0 = arith.constant 0 : index
    %c0_0 = arith.constant 0 : index
    %c0_1 = arith.constant 0 : index
    %0 = vector.load %arg2[%c0, %c0_0, %c0_1] : memref<1x64x16xf32, #tpu.memory_space<vmem>>, vector<1x64x16xf32>
    %1 = vector.shape_cast %0 : vector<1x64x16xf32> to vector<64x16xf32>
    %cst = arith.constant dense<0.000000e+00> : vector<16xf32>
    %2 = vector.multi_reduction <add>, %1, %cst [0] : vector<64x16xf32> to vector<16xf32>
    %3 = vector.shape_cast %2 : vector<16xf32> to vector<1x16xf32>
    %cst_2 = arith.constant 1.562500e-02 : f32
    %4 = vector.broadcast %cst_2 : f32 to vector<1x16xf32>
    %5 = arith.mulf %3, %4 : vector<1x16xf32>
    %c0_i32 = arith.constant 0 : i32
    %6 = arith.sitofp %c0_i32 : i32 to f32
    %7 = vector.broadcast %6 : f32 to vector<1x1xf32>
    %8 = tpu.concatenate %7, %5 in 1 : vector<1x1xf32>, vector<1x16xf32> -> vector<1x17xf32>
    %9 = vector.broadcast %6 : f32 to vector<1x1xf32>
    %10 = tpu.concatenate %8, %9 in 1 : vector<1x17xf32>, vector<1x1xf32> -> vector<1x18xf32>
    %c0_3 = arith.constant 0 : index
    %11 = memref.load %arg1[%c0_3] : memref<3xf32, #tpu.memory_space<smem>>
    %12 = vector.extract_strided_slice %10 {offsets = [0, 0], sizes = [1, 16], strides = [1, 1]} : vector<1x18xf32> to vector<1x16xf32>
    %13 = vector.broadcast %11 : f32 to vector<1x16xf32>
    %14 = arith.mulf %13, %12 : vector<1x16xf32>
    %c1 = arith.constant 1 : index
    %15 = memref.load %arg1[%c1] : memref<3xf32, #tpu.memory_space<smem>>
    %16 = vector.extract_strided_slice %10 {offsets = [0, 1], sizes = [1, 16], strides = [1, 1]} : vector<1x18xf32> to vector<1x16xf32>
    %17 = vector.broadcast %15 : f32 to vector<1x16xf32>
    %18 = arith.mulf %17, %16 : vector<1x16xf32>
    %19 = arith.addf %14, %18 : vector<1x16xf32>
    %c2 = arith.constant 2 : index
    %20 = memref.load %arg1[%c2] : memref<3xf32, #tpu.memory_space<smem>>
    %21 = vector.extract_strided_slice %10 {offsets = [0, 2], sizes = [1, 16], strides = [1, 1]} : vector<1x18xf32> to vector<1x16xf32>
    %22 = vector.broadcast %20 : f32 to vector<1x16xf32>
    %23 = arith.mulf %22, %21 : vector<1x16xf32>
    %24 = arith.addf %19, %23 : vector<1x16xf32>
    %25 = arith.negf %24 : vector<1x16xf32>
    %26 = math.exp %25 : vector<1x16xf32>
    %cst_4 = arith.constant 1.000000e+00 : f32
    %27 = vector.broadcast %cst_4 : f32 to vector<1x16xf32>
    %28 = arith.addf %27, %26 : vector<1x16xf32>
    %29 = arith.divf %27, %28 : vector<1x16xf32>
    %30 = vector.broadcast %29 : vector<1x16xf32> to vector<64x16xf32>
    %31 = arith.mulf %1, %30 : vector<64x16xf32>
    %c0_5 = arith.constant 0 : index
    %c0_6 = arith.constant 0 : index
    %c0_7 = arith.constant 0 : index
    %32 = vector.load %arg3[%c0_5, %c0_6, %c0_7] : memref<1x64x16xf32, #tpu.memory_space<vmem>>, vector<1x64x16xf32>
    %33 = vector.shape_cast %32 : vector<1x64x16xf32> to vector<64x16xf32>
    %34 = vector.shape_cast %31 : vector<64x16xf32> to vector<1x64x16xf32>
    tpu.vector_store %arg3[%c0_5, %c0_6, %c0_7], %34 {strides = array<i32>} : memref<1x64x16xf32, #tpu.memory_space<vmem>>, vector<1x64x16xf32>,
    return
  }
  func.func @transform_0(%arg0: i32) -> i32 {
    %c0_i32 = arith.constant 0 : i32
    %c0_i32_0 = arith.constant 0 : i32
    return %c0_i32 : i32
  }
  func.func @transform_1(%arg0: i32) -> (i32, i32, i32) {
    %c0_i32 = arith.constant 0 : i32
    %c0_i32_0 = arith.constant 0 : i32
    %c0_i32_1 = arith.constant 0 : i32
    return %arg0, %c0_i32, %c0_i32_0 : i32, i32, i32
  }
  func.func @transform_2(%arg0: i32) -> (i32, i32, i32) {
    %c0_i32 = arith.constant 0 : i32
    %c0_i32_0 = arith.constant 0 : i32
    %c0_i32_1 = arith.constant 0 : i32
    return %arg0, %c0_i32, %c0_i32_0 : i32, i32, i32
  }
}

</mosaic_0001>

<llo_original>
// kernel: tpu_custom_call.1
$region0: #{tpu_custom_call.1}
  #allocation0 [shape = 'u32[]', space=smem, size = 0x4, offset = 0x4, fixed_abs, tag = 'smem constant byte address 0x4 - core index']
  #allocation1 [shape = 'u32[144,128]{1,0:T(1,128)}', space=vmem, size = 0x12000, scoped, tag = 'internal scratch']
  %s0 = inlined_call_operand.vmem [shape: f32[3], index: 0, kind: input, shape index: {}]
  %s1 = inlined_call_operand.vmem [shape: f32[2,64,16], index: 1, kind: input, shape index: {}]
  %s2 = inlined_call_operand.vmem [shape: f32[2,64,16], index: 2, kind: output, shape index: {}]
  %s3 = sld [smem:[#allocation0]]
  $region45: #{tpu_custom_call.1} parent=0
    _
  %s5 = ssub.s32 1, %s3
  %s6 = scalar_select 0, %s5, %s3
  $region1: #{tpu_custom_call.1} parent=0
    #allocation2 [shape = 'u8[512]{0}', space=smem, size = 0x200, scoped, tag = 'input window, operand 0, single buffered']
    #allocation3 [shape = 's32[2]{0}', space=sflag, size = 0x8, scoped, tag = 'scoped memory for tpu_custom_call.1']
    %7 = vsyncpa [#allocation3], 0
    loop: start=0, step=1, limit=4
    $region2: #{tpu_custom_call.1} parent=1 // loop_pre_header
      _
    $region3: #{tpu_custom_call.1} parent=1 // loop_header
      %s9 = sphi 0, %s13
      %p10 = scmp.ge.s32.totalorder %s9, 4
      %s17 = sphi 0, %s17
      %s19 = sphi 0, %s17
      %s20 = sphi 0, %s19
      %s34 = sphi 0, %s20
      %s40 = sphi 0, %s42
      %s43 = sphi 0, %s40
      %s44 = sphi 0, %s43
      %s60 = sphi 0, %s44
      %s66 = sphi 0, %s68
      %s69 = sphi 0, %s66
      %s70 = sphi 0, %s69
      %s86 = sphi 0, %s70
    $region4: #{tpu_custom_call.1} parent=1 // loop_header_branch
      %12 = sbr.rel (%p10) target = $region8
    $region5: #{tpu_custom_call.1} parent=1 // loop_body
      %s14 = ssub.s32 %s9, 1
      %s15 = ssub.s32 %s9, 2
      %s16 = sadd.s32 %s9, 1
      %s18 = sadd.s32 %s17, 1
      %p21 = scmp.eq.s32.totalorder %s9, 1
      %p22 = scmp.ne.s32.totalorder %s17, %s19
      %p23 = scmp.eq.s32.totalorder %s9, 0
      %p24 = por %p22, %p23
      %p25 = scmp.ne.s32.totalorder %s17, %s19
      %p26 = scmp.eq.s32.totalorder %s14, 1
      %p27 = por %p25, %p26
      %p28 = scmp.ne.s32.totalorder %s19, %s20
      %p29 = scmp.eq.s32.totalorder %s14, 0
      %p30 = por %p28, %p29
      %p31 = scmp.ne.s32.totalorder %s19, %s20
      %p32 = scmp.eq.s32.totalorder %s15, 1
      %p33 = por %p31, %p32
      %p35 = scmp.ne.s32.totalorder %s20, %s34
      %p36 = scmp.eq.s32.totalorder %s15, 0
      %p37 = por %p35, %p36
      %s38 = ssub.s32 %s9, %s16
      %p39 = scmp.eq.s32.totalorder %s38, 0
      %s41 = sadd.s32 %s40, 1
      %s42 = scalar_select %p39, %s40, %s41
      %p45 = pneg %p39
      %p46 = scmp.eq.s32.totalorder %s9, 1
      %p47 = por %p45, %p46
      %p48 = scmp.ne.s32.totalorder %s40, %s43
      %p49 = scmp.eq.s32.totalorder %s9, 0
      %p50 = por %p48, %p49
      %p51 = scmp.ne.s32.totalorder %s40, %s43
      %p52 = scmp.eq.s32.totalorder %s14, 1
      %p53 = por %p51, %p52
      %p54 = scmp.ne.s32.totalorder %s43, %s44
      %p55 = scmp.eq.s32.totalorder %s14, 0
      %p56 = por %p54, %p55
      %p57 = scmp.ne.s32.totalorder %s43, %s44
      %p58 = scmp.eq.s32.totalorder %s15, 1
      %p59 = por %p57, %p58
      %p61 = scmp.ne.s32.totalorder %s44, %s60
      %p62 = scmp.eq.s32.totalorder %s15, 0
      %p63 = por %p61, %p62
      %s64 = ssub.s32 %s9, %s16
      %p65 = scmp.eq.s32.totalorder %s64, 0
      %s67 = sadd.s32 %s66, 1
      %s68 = scalar_select %p65, %s66, %s67
      %p71 = pneg %p65
      %p72 = scmp.eq.s32.totalorder %s9, 1
      %p73 = por %p71, %p72
      %p74 = scmp.ne.s32.totalorder %s66, %s69
      %p75 = scmp.eq.s32.totalorder %s9, 0
      %p76 = por %p74, %p75
      %p77 = scmp.ne.s32.totalorder %s66, %s69
      %p78 = scmp.eq.s32.totalorder %s14, 1
      %p79 = por %p77, %p78
      %p80 = scmp.ne.s32.totalorder %s69, %s70
      %p81 = scmp.eq.s32.totalorder %s14, 0
      %p82 = por %p80, %p81
      %p83 = scmp.ne.s32.totalorder %s69, %s70
      %p84 = scmp.eq.s32.totalorder %s15, 1
      %p85 = por %p83, %p84
      %p87 = scmp.ne.s32.totalorder %s70, %s86
      %p88 = scmp.eq.s32.totalorder %s15, 0
      %p89 = por %p87, %p88
      %p90 = scmp.le.s32.totalorder 1, %s9
      %p91 = scmp.lt.s32.totalorder %s9, 3
      %p92 = pnand %p90, %p91
      %p93 = pneg %p92
      // Predicated region
      $region9: #{tpu_custom_call.1} parent=5 // pred_check
        _
      $region10: #{tpu_custom_call.1} parent=5 // pred_check_branch
        %95 = sbr.rel (%p92) target = $region12
      $region11: #{tpu_custom_call.1} parent=5 // pred_region
        %s96 = ssub.s32 %s9, 1
        // Predicated region
        $region13: #{tpu_custom_call.1} parent=11 // pred_check
          %p97 = pneg %p30
        $region14: #{tpu_custom_call.1} parent=11 // pred_check_branch
          %99 = sbr.rel (%p97) target = $region16
        $region15: #{tpu_custom_call.1} parent=11 // pred_region
          %s101 = ssub.s32 16, 16
          %102 = vsyncadd [#allocation3], %s101
          %s104 = sshll.u32 %s0, 4
          %s105 = int_to_ptr.vmem [resolvable:$true] %s104
          %107 = dma.vmem_to_smem %s105, 16, [#allocation2], [#allocation3]
        $region16: #{tpu_custom_call.1} parent=11 // pred_fallthru
          _
      $region12: #{tpu_custom_call.1} parent=5 // pred_fallthru
        _
      %p108 = scmp.lt.s32.totalorder %s9, 2
      // Predicated region
      $region17: #{tpu_custom_call.1} parent=5 // pred_check
        %p109 = pneg %p108
      $region18: #{tpu_custom_call.1} parent=5 // pred_check_branch
        %111 = sbr.rel (%p109) target = $region20
      $region19: #{tpu_custom_call.1} parent=5 // pred_region
        // Predicated region
        $region21: #{tpu_custom_call.1} parent=19 // pred_check
          %p112 = pneg %p50
        $region22: #{tpu_custom_call.1} parent=19 // pred_check_branch
          %114 = sbr.rel (%p112) target = $region24
        $region23: #{tpu_custom_call.1} parent=19 // pred_region
          %p115 = scmp.lt.s32.totalorder %s9, 1
          %s116 = scalar_select %p115, %s9, 1
          %s117 = smul.addr %s116, 8
          %s118 = smul.addr %s117, 8
          %s119 = scalar_lea.vmem %s1, %s118
        $region24: #{tpu_custom_call.1} parent=19 // pred_fallthru
          _
      $region20: #{tpu_custom_call.1} parent=5 // pred_fallthru
        _
      %p120 = scmp.le.s32.totalorder 1, %s9
      %p121 = scmp.lt.s32.totalorder %s9, 3
      %p122 = pnand %p120, %p121
      %p123 = pneg %p122
      // Predicated region
      $region25: #{tpu_custom_call.1} parent=5 // pred_check
        _
      $region26: #{tpu_custom_call.1} parent=5 // pred_check_branch
        %125 = sbr.rel (%p122) target = $region28
      $region27: #{tpu_custom_call.1} parent=5 // pred_region
        %s126 = ssub.s32 %s9, 1
        // Predicated region
        $region29: #{tpu_custom_call.1} parent=27 // pred_check
          %p127 = pneg %p30
        $region30: #{tpu_custom_call.1} parent=27 // pred_check_branch
          %129 = sbr.rel (%p127) target = $region32
        $region31: #{tpu_custom_call.1} parent=27 // pred_region
          %130 = dma.done [#allocation3], 16
        $region32: #{tpu_custom_call.1} parent=27 // pred_fallthru
          _
        %131 = sfence
        %p132 = pneg %p30
        %p133 = pneg %p27
        %p134 = scmp.lt.s32.totalorder %s14, 1
        %s135 = scalar_select %p134, %s14, 1
        %s136 = smul.addr %s135, 8
        %s137 = smul.addr %s136, 8
        %s138 = scalar_lea.vmem %s1, %s137
        %p139 = pneg %p56
        %p140 = pneg %p53
        %p141 = pneg %p82
        %p142 = pneg %p79
        %p143 = scmp.lt.s32.totalorder %s14, 1
        %s144 = scalar_select %p143, %s14, 1
        %s145 = smul.addr %s144, 8
        %s146 = smul.addr %s145, 8
        %s147 = scalar_lea.vmem %s2, %s146
        %p148 = scmp.lt.s32.totalorder %s14, 1
        %s149 = scalar_select %p148, %s14, 1
        %s150 = smul.addr %s149, 8
        %s151 = smul.addr %s150, 8
        %s152 = scalar_lea.vmem %s1, %s151
        %p153 = scmp.lt.s32.totalorder %s14, 1
        %s154 = scalar_select %p153, %s14, 1
        %s155 = smul.addr %s154, 8
        %s156 = smul.addr %s155, 8
        %s157 = scalar_lea.vmem %s2, %s156
        %v158 = vld [vmem:[%s152] sm:$0xff]
        %v159 = vld [vmem:[%s152 + $0x8] sm:$0xff]
        %v160 = vld [vmem:[%s152 + $0x10] sm:$0xff]
        %v161 = vld [vmem:[%s152 + $0x18] sm:$0xff]
        %v162 = vld [vmem:[%s152 + $0x20] sm:$0xff]
        %v163 = vld [vmem:[%s152 + $0x28] sm:$0xff]
        %v164 = vld [vmem:[%s152 + $0x30] sm:$0xff]
        %v165 = vld [vmem:[%s152 + $0x38] sm:$0xff]
        %vm166 = vcmask 130048
        %v167 = vsel %vm166, %v158, 0.0
        %v168 = vsel %vm166, %v159, 0.0
        %v169 = vadd.f32 %v167, %v168
        %v170 = vsel %vm166, %v160, 0.0
        %v171 = vadd.f32 %v169, %v170
        %v172 = vsel %vm166, %v161, 0.0
        %v173 = vadd.f32 %v171, %v172
        %v174 = vsel %vm166, %v162, 0.0
        %v175 = vadd.f32 %v173, %v174
        %v176 = vsel %vm166, %v163, 0.0
        %v177 = vadd.f32 %v175, %v176
        %v178 = vsel %vm166, %v164, 0.0
        %v179 = vadd.f32 %v177, %v178
        %v180 = vsel %vm166, %v165, 0.0
        %v181 = vadd.f32 %v179, %v180
        %v182 = vrot.slane %v181, 4
        %v183 = vadd.f32 %v181, %v182
        %v184 = vrot.slane %v183, 2
        %v185 = vadd.f32 %v183, %v184
        %v186 = vrot.slane %v185, 1
        %v187 = vadd.f32 %v185, %v186
        %v188 = vmul.f32 %v187, 0.015625
        %190 = vrot.lane.b32.xlu0 %v188, 1
        %v191 = vpop.permute.xlu0 %190
        %vm193 = vcmask 7168
        %v194 = vsel %vm193, 0.0, %v191
        %vm195 = vcmask 138240
        %v196 = vsel %vm195, %v194, 0.0
        %s197 = sld [smem:[#allocation2]]
        %v198 = vstv %s197
        %v199 = vmul.f32 %v198, %v196
        %s200 = sld [smem:[#allocation2 + $0x1]]
        %v201 = vstv %s200
        %v202 = vmul.f32 %v201, %v196
        %204 = vrot.lane.b32.xlu0 %v202, 127
        %v205 = vpop.permute.xlu0 %204
        %v207 = vadd.f32 %v199, %v205
        %s208 = sld [smem:[#allocation2 + $0x2]]
        %v209 = vstv %s208
        %v210 = vmul.f32 %v209, %v196
        %212 = vrot.lane.b32.xlu0 %v210, 126
        %v213 = vpop.permute.xlu0 %212
        %v215 = vadd.f32 %v207, %v213
        %v216 = vxor.u32 %v215, 2147483648
        %v217 = vmul.f32 %v216, 1.442695
        %v218 = vpow.pop %v217
        %v219 = vadd.f32 %v218, 1.0
        %v220 = vrcp.pop %v219
        %v221 = vmul.f32 1.0, %v220
        %v222 = vlaneseq
        %v223 = vshrl.u32 %v222, 7
        %v224 = vsub.s32 0, %v223
        %v225 = vrot.slane %v221, %v224
        %v226 = vmul.f32 %v158, %v225
        %v227 = vmul.f32 %v159, %v225
        %v228 = vmul.f32 %v160, %v225
        %v229 = vmul.f32 %v161, %v225
        %v230 = vmul.f32 %v162, %v225
        %v231 = vmul.f32 %v163, %v225
        %v232 = vmul.f32 %v164, %v225
        %v233 = vmul.f32 %v165, %v225
        %234 = vst.msk [vmem:[%s157] sm:$0xff] %vm166, %v226
        %235 = vst.msk [vmem:[%s157 + $0x8] sm:$0xff] %vm166, %v227
        %236 = vst.msk [vmem:[%s157 + $0x10] sm:$0xff] %vm166, %v228
        %237 = vst.msk [vmem:[%s157 + $0x18] sm:$0xff] %vm166, %v229
        %238 = vst.msk [vmem:[%s157 + $0x20] sm:$0xff] %vm166, %v230
        %239 = vst.msk [vmem:[%s157 + $0x28] sm:$0xff] %vm166, %v231
        %240 = vst.msk [vmem:[%s157 + $0x30] sm:$0xff] %vm166, %v232
        %241 = vst.msk [vmem:[%s157 + $0x38] sm:$0xff] %vm166, %v233
        %p242 = scmp.lt.s32.totalorder %s14, 1
        %s243 = scalar_select %p242, %s14, 1
        %s244 = smul.addr %s243, 8
        %s245 = smul.addr %s244, 8
        %s246 = scalar_lea.vmem %s2, %s245
        // Predicated region
        $region33: #{tpu_custom_call.1} parent=27 // pred_check
          %p247 = pneg %p79
        $region34: #{tpu_custom_call.1} parent=27 // pred_check_branch
          %249 = sbr.rel (%p247) target = $region36
        $region35: #{tpu_custom_call.1} parent=27 // pred_region
          _
        $region36: #{tpu_custom_call.1} parent=27 // pred_fallthru
          _
      $region28: #{tpu_custom_call.1} parent=5 // pred_fallthru
        _
      %p250 = scmp.le.s32.totalorder 2, %s9
      // Predicated region
      $region37: #{tpu_custom_call.1} parent=5 // pred_check
        %p251 = pneg %p250
      $region38: #{tpu_custom_call.1} parent=5 // pred_check_branch
        %253 = sbr.rel (%p251) target = $region40
      $region39: #{tpu_custom_call.1} parent=5 // pred_region
        %s254 = ssub.s32 %s9, 2
        // Predicated region
        $region41: #{tpu_custom_call.1} parent=39 // pred_check
          %p255 = pneg %p85
        $region42: #{tpu_custom_call.1} parent=39 // pred_check_branch
          %257 = sbr.rel (%p255) target = $region44
        $region43: #{tpu_custom_call.1} parent=39 // pred_region
          %p258 = scmp.lt.s32.totalorder %s15, 1
          %s259 = scalar_select %p258, %s15, 1
          %s260 = smul.addr %s259, 8
          %s261 = smul.addr %s260, 8
          %s262 = scalar_lea.vmem %s2, %s261
        $region44: #{tpu_custom_call.1} parent=39 // pred_fallthru
          _
      $region40: #{tpu_custom_call.1} parent=5 // pred_fallthru
        _
    $region6: #{tpu_custom_call.1} parent=1 // loop_footer
      %s13 = sadd.s32 1, %s9
    $region7: #{tpu_custom_call.1} parent=1 // loop_footer_branch
      %8 = sbr.rel target = $region3
    $region8: #{tpu_custom_call.1} parent=1 // loop_exit
      _
    %263 = vsyncpa [#allocation3], 1
    %s264 = scalar_lea.sflag [#allocation3], 1
    %265 = vsyncpa %s264, 1

</llo_original>
